<compile_context>
chip_gen: v5e
topology: v5e:2x2
jax: 0.10.0
libtpu: 0.0.40
codegen_flags: <defaults>
</compile_context>

<pallas_src>
import functools

import numpy as np
import jax
import jax.numpy as jnp
from jax import lax
from jax.experimental import pallas as pl
from jax.experimental.pallas import tpu as pltpu


def _round_up(x, m):
    return -(-x // m) * m


# --------------------------- Pallas kernels --------------------------------

def _copy_loss_kernel(out_ref, cp_ref, tgt_ref, aln_ref, loss_ref, *,
                      sqlen, force_copy, unk_index, ignore_index, eps):
    """No-label-smoothing branch of CopyGeneratorLoss.forward (one seq tile)."""
    o = out_ref[0]                               # (rt, V)  native score dtype
    c = cp_ref[0]                                # (rt, Vc) native score dtype
    tgt = tgt_ref[0]                             # (rt, 1) i32
    aln = aln_ref[0]                             # (rt, 1) i32
    rt, v = o.shape
    vc = c.shape[1]
    eps = jnp.float32(eps)

    col_v = lax.broadcasted_iota(jnp.int32, (1, v), 1)
    col_c = lax.broadcasted_iota(jnp.int32, (1, vc), 1)

    # gather(scores, 1, target) / gather(scores, 1, align + vocab_size):
    # at most one non-zero per row, so summing in the native dtype is exact;
    # only the narrow (rt, 1) results are upcast to f32 (no full-width f32
    # copies of the score tiles).
    vocab_probs = jnp.sum(jnp.where(col_v == tgt, o, jnp.zeros_like(o)),
                          axis=1, keepdims=True).astype(jnp.float32)
    copy_tok = jnp.sum(jnp.where(col_c == aln, c, jnp.zeros_like(c)),
                       axis=1, keepdims=True).astype(jnp.float32)

    is_unk_aln = aln == unk_index
    copy_tok = jnp.where(is_unk_aln, 0.0, copy_tok) + eps
    non_copy = is_unk_aln
    if not force_copy:
        non_copy = non_copy | (tgt != unk_index)
    probs = jnp.where(non_copy, copy_tok + vocab_probs, copy_tok)
    # eps appears twice on purpose: the reference module does
    # (copy_tok + eps) and then -(probs + eps).log().
    loss = -jnp.log(probs + eps)

    row = lax.broadcasted_iota(jnp.int32, (rt, 1), 0) + pl.program_id(1) * rt
    keep = (row < sqlen) & (tgt != ignore_index)
    loss_ref[0] = jnp.where(keep, loss, 0.0)


def _copy_loss_ls_kernel(out_ref, cp_ref, tail_ref, mapc_ref, tgt_ref, aln_ref,
                         loss_ref, *, sqlen, k, force_copy, unk_index,
                         ignore_index, eps, label_smoothing, log_dtype):
    """Label-smoothing branch: collapse_copy_scores + smoothed NLL (one tile)."""
    o = out_ref[0]                               # (rt, V)   native dtype
    c0 = cp_ref[0]                               # (rt, Vc)  native dtype
    tail = tail_ref[0]                           # (1, Vc)   i32, per-batch const
    mapc = mapc_ref[0]                           # (Vc, 1)   i32, per-batch const
    tgt = tgt_ref[0]                             # (rt, 1)   i32
    aln = aln_ref[0]                             # (rt, 1)   i32
    rt, v = o.shape
    vc = c0.shape[1]
    eps = jnp.float32(eps)

    col_v = lax.broadcasted_iota(jnp.int32, (1, v), 1)
    col_c = lax.broadcasted_iota(jnp.int32, (1, vc), 1)

    # ---- per-batch (1, Vc) constants: vectorized, no per-k unrolled loop.
    # scores_mask: zero the blank (copy) columns 1..k, but keep columns whose
    # padded_fill value is 0 (keep_src_vocab_unk).
    in_blank = (col_c >= 1) & (col_c <= k)
    keep_c = jnp.logical_or(jnp.logical_not(in_blank), tail == 0)    # (1, Vc)
    mask_sum = jnp.float32(v) + jnp.sum(keep_c.astype(jnp.float32),
                                        axis=1, keepdims=True)       # (1, 1)

    # scores[padded_fill == -1] = 0 (only ever hits the copy block)
    c = jnp.where(tail == -1, jnp.zeros_like(c0), c0)                # (rt, Vc)

    # ---- collapse_copy_scores scatter as a one-hot MXU matmul:
    # scat[j, t] = 1 iff copy column j is a blank column whose (positive)
    # src->tgt map id is t; everything else (pad columns, -1 / 0 map ids)
    # is a zero row (ids <= 0 were redirected to -7 in the wrapper).
    scat = (col_v == mapc).astype(c.dtype)                           # (Vc, V)
    o_add = jnp.dot(c, scat, preferred_element_type=jnp.float32)     # (rt, V) f32
    o_coll = o_add + o                                               # (rt, V) f32

    # ---- smoothed NLL, reformulated so no full-width label/"final" arrays
    # are built (equivalent to sum(-log(S*mask+eps) * final_labels)).
    neglog_o = -jnp.log(o_coll.astype(log_dtype) + eps)              # EUP, (rt, V)
    neglog_c = -jnp.log(c.astype(log_dtype) + eps)                   # (rt, Vc)
    sum_neglog = (
        jnp.sum(neglog_o, axis=1, keepdims=True, dtype=jnp.float32)
        + jnp.sum(jnp.where(keep_c, neglog_c, jnp.zeros_like(neglog_c)),
                  axis=1, keepdims=True, dtype=jnp.float32))         # (rt, 1)

    label_o = jnp.sum(jnp.where(col_v == tgt, o_coll, 0.0),
                      axis=1, keepdims=True)                         # f32
    label_c = jnp.sum(jnp.where(col_c == aln, c, jnp.zeros_like(c)),
                      axis=1, keepdims=True).astype(jnp.float32)
    label_c_mask = jnp.sum(
        jnp.where(col_c == aln, keep_c.astype(jnp.float32), 0.0),
        axis=1, keepdims=True)

    non_copy = aln == unk_index
    if not force_copy:
        non_copy = non_copy | (tgt != unk_index)
    label_val = jnp.where(non_copy, label_o, label_c)
    label_msk = jnp.where(non_copy, 1.0, label_c_mask)

    confidence = jnp.float32(1.0 - label_smoothing)
    smoothing = jnp.float32(label_smoothing) / mask_sum              # (1, 1)

    loss = (smoothing * sum_neglog
            + (confidence - smoothing) * label_msk * (-jnp.log(label_val + eps)))

    row = lax.broadcasted_iota(jnp.int32, (rt, 1), 0) + pl.program_id(1) * rt
    keep = (row < sqlen) & (tgt != ignore_index)
    loss_ref[0] = jnp.where(keep, loss, 0.0)


# --------------------------- wrapper ---------------------------------------

def copy_generator_loss(out_prob, copy_prob, align, target, src_tgt_map,
                        label_smoothing, *, vocab_size, force_copy,
                        unk_index=0, ignore_index=0, eps=1e-10,
                        seq_tile=None, score_tile_bytes=None,
                        vmem_limit_bytes=None, log_dtype=None):
    """JAX/Pallas equivalent of CopyGeneratorLoss.forward.

    out_prob:  (bs*sqlen, vocab_size)   target-vocab probabilities
    copy_prob: (bs*sqlen, copy_width)   copy/attention probabilities
    align, target: (bs, sqlen) int;  src_tgt_map: (bs, m) int
    Returns the flat per-token loss of shape (bs*sqlen,), float32.
    """
    bs, sqlen = align.shape
    n = bs * sqlen
    v = out_prob.shape[-1]
    vc = copy_prob.shape[-1]
    assert v == vocab_size, (v, vocab_size)

    # No (n, V+Vc) concat and no per-row repeat of the map in HBM: the two
    # score tensors keep their incoming dtype (bf16 halves traffic on
    # v6e/v7x) and the map is indexed per batch through its BlockSpec.
    out3 = out_prob.reshape(bs, sqlen, v)
    cp3 = copy_prob.reshape(bs, sqlen, vc)
    tgt3 = target.reshape(bs, sqlen, 1).astype(jnp.int32)
    aln3 = align.reshape(bs, sqlen, 1).astype(jnp.int32)

    itemsize = max(jnp.dtype(out3.dtype).itemsize, jnp.dtype(cp3.dtype).itemsize)

    # Generation-aware VMEM / tile budgets: 128 MiB VMEM parts (v5e/v6e) get
    # bigger tiles + a higher scoped limit; 64 MiB parts (v7x) stay at 48 MiB.
    if score_tile_bytes is None or vmem_limit_bytes is None:
        try:
            vmem_cap = pltpu.get_tpu_info().vmem_capacity_bytes
        except Exception:                        # conservative fallback
            vmem_cap = 64 << 20
        big_vmem = vmem_cap >= (100 << 20)
        if score_tile_bytes is None:
            score_tile_bytes = (12 << 20) if big_vmem else (6 << 20)
        if vmem_limit_bytes is None:
            vmem_limit_bytes = (100 << 20) if big_vmem else (48 << 20)

    row_align = 8 if itemsize >= 4 else 16
    if seq_tile is None:
        if label_smoothing:
            # double-buffered native inputs + f32 collapsed scores / neglog
            # temporaries inside the kernel (review item: count f32 temps).
            per_row = 2 * itemsize * (v + vc) + 4 * (2 * v + 2 * vc)
            fixed = itemsize * vc * v            # (Vc, V) one-hot scatter matrix
        else:
            per_row = 2 * itemsize * (v + vc) + 4 * v
            fixed = 0
        avail = max(score_tile_bytes - fixed, per_row * row_align)
        rt = (avail // per_row) // row_align * row_align
        rt = max(row_align, min(512, rt))
    else:
        rt = seq_tile
    rt = min(rt, _round_up(sqlen, row_align))
    nst = pl.cdiv(sqlen, rt)
    grid = (bs, nst)

    def spec(width):
        return pl.BlockSpec((1, rt, width), lambda b, s: (b, s, 0))

    params = pltpu.CompilerParams(
        dimension_semantics=("parallel", "parallel"),
        vmem_limit_bytes=vmem_limit_bytes)
    out_shape = jax.ShapeDtypeStruct((bs, sqlen, 1), jnp.float32)

    if label_smoothing:
        m = src_tgt_map.shape[1]
        k = m - 1
        assert vc >= m, (vc, m)      # torch's blank gather needs V+m-1 < V+Vc
        if log_dtype is None:
            # bf16 EUP log only when the scores themselves are bf16 (v6e/v7x
            # win; pass log_dtype=jnp.float32 explicitly on v5e).
            log_dtype = (jnp.bfloat16
                         if jnp.dtype(out3.dtype) == jnp.dtype(jnp.bfloat16)
                         else jnp.float32)
        smap = src_tgt_map.astype(jnp.int32)
        # padded_fill tail as a per-batch row (sentinel 2 == "neither -1 nor 0")
        tail3 = jnp.concatenate(
            [jnp.full((bs, vc - k), 2, jnp.int32), smap[:, 1:]],
            axis=1).reshape(bs, 1, vc)
        # scatter map as a per-batch column over copy columns: entry j is the
        # positive target-vocab id that blank column j maps to, else -7
        # (-1/0 map ids land on col 0 in torch, which is then zeroed anyway).
        mcol = jnp.full((bs, vc), -7, jnp.int32)
        mcol = mcol.at[:, 1:m].set(smap[:, 1:])
        mcol = jnp.where(mcol > 0, mcol, -7)
        mapcol3 = mcol.reshape(bs, vc, 1)

        kernel = functools.partial(
            _copy_loss_ls_kernel, sqlen=sqlen, k=k, force_copy=force_copy,
            unk_index=unk_index, ignore_index=ignore_index, eps=eps,
            label_smoothing=float(label_smoothing), log_dtype=log_dtype)
        loss = pl.pallas_call(
            kernel, out_shape=out_shape, grid=grid,
            in_specs=[spec(v), spec(vc),
                      pl.BlockSpec((1, 1, vc), lambda b, s: (b, 0, 0)),
                      pl.BlockSpec((1, vc, 1), lambda b, s: (b, 0, 0)),
                      spec(1), spec(1)],
            out_specs=spec(1),
            compiler_params=params,
        )(out3, cp3, tail3, mapcol3, tgt3, aln3)
    else:
        kernel = functools.partial(
            _copy_loss_kernel, sqlen=sqlen, force_copy=force_copy,
            unk_index=unk_index, ignore_index=ignore_index, eps=eps)
        loss = pl.pallas_call(
            kernel, out_shape=out_shape, grid=grid,
            in_specs=[spec(v), spec(vc), spec(1), spec(1)],
            out_specs=spec(1),
            compiler_params=params,
        )(out3, cp3, tgt3, aln3)
    return loss.reshape(n)


# --------------------------- numpy references -------------------------------

def _ref_no_ls(out_prob, copy_prob, align, target, vocab_size, force_copy,
               unk_index, ignore_index, eps):
    scores = np.concatenate([out_prob, copy_prob], axis=1).astype(np.float64)
    ft = target.reshape(-1)
    fa = align.reshape(-1)
    rows = np.arange(ft.shape[0])
    vocab_probs = scores[rows, ft]
    copy_tok = scores[rows, fa + vocab_size].copy()
    copy_tok[fa == unk_index] = 0.0
    copy_tok = copy_tok + eps
    non_copy = fa == unk_index
    if not force_copy:
        non_copy = non_copy | (ft != unk_index)
    probs = np.where(non_copy, copy_tok + vocab_probs, copy_tok)
    loss = -np.log(probs + eps)
    loss[ft == ignore_index] = 0.0
    return loss


def _ref_ls(out_prob, copy_prob, align, target, src_tgt_map, vocab_size,
            force_copy, unk_index, ignore_index, eps, label_smoothing):
    bs, sq = align.shape
    scores = np.concatenate([out_prob, copy_prob], axis=1).astype(np.float64)
    n, vext = scores.shape
    m = src_tgt_map.shape[1]
    k = m - 1
    fill = np.repeat(src_tgt_map[:, 1:], sq, axis=0)
    pad = np.ones((n, vext - k))
    padded_fill = np.concatenate([pad, fill], axis=1)
    scores[padded_fill == -1] = 0.0
    nn_map = src_tgt_map.copy()
    nn_map[nn_map == -1] = 0
    blank = vocab_size + np.arange(1, m)
    nn_fill = np.repeat(nn_map[:, 1:], sq, axis=0)
    indexed = scores[:, blank]
    add_scores = np.zeros_like(scores)
    for r in range(n):
        for j in range(k):
            add_scores[r, nn_fill[r, j]] = indexed[r, j]
    add_scores[:, 0] = 0.0
    scores = scores + add_scores
    mask = np.ones_like(scores)
    mask[:, blank] = 0.0
    mask[padded_fill == 0] = 1.0
    scores = scores * mask
    ft = target.reshape(-1)
    fa = align.reshape(-1)
    confidence = 1.0 - label_smoothing
    smoothing = label_smoothing / mask.sum(axis=1, keepdims=True)
    rows = np.arange(n)
    tgt_lab = np.zeros_like(scores); tgt_lab[rows, ft] = 1.0
    copy_lab = np.zeros_like(scores); copy_lab[rows, fa + vocab_size] = 1.0
    non_copy = fa == unk_index
    if not force_copy:
        non_copy = non_copy | (ft != unk_index)
    final = np.where(non_copy[:, None], tgt_lab, copy_lab)
    final = final * (confidence - smoothing) + smoothing
    final = final * mask
    loss = np.sum(-np.log(scores + eps) * final, axis=1)
    loss[ft == ignore_index] = 0.0
    return loss


# --------------------------- demo / check ----------------------------------

if __name__ == "__main__":
    bs, sqlen = 2, 8
    vocab_size = 32
    src_map_size = 8            # extended (source) vocab size == copy region width
    n = bs * sqlen
    vext = vocab_size + src_map_size

    key = jax.random.PRNGKey(0)
    k_p, k_a, k_t, k_m = jax.random.split(key, 4)

    u = jax.random.uniform(k_p, (n, vext), jnp.float32) + 0.05
    probs = u / jnp.sum(u, axis=1, keepdims=True)            # rows sum to 1
    out_prob = probs[:, :vocab_size]
    copy_prob = probs[:, vocab_size:]

    align = jax.random.randint(k_a, (bs, sqlen), 0, src_map_size)
    target = jax.random.randint(k_t, (bs, sqlen), 0, vocab_size)
    # make sure unk / ignore code paths get exercised
    align = align.at[0, 1].set(0)
    target = target.at[0, 0].set(0)
    target = target.at[1, 3].set(0)

    # src->tgt vocab map: col 0 is ignored downstream; remaining cols are
    # distinct non-zero tgt ids, with a few -1 (no mapping) and 0 (tgt unk).
    rows = []
    for b in range(bs):
        perm = jax.random.permutation(jax.random.fold_in(k_m, b),
                                      jnp.arange(1, vocab_size))[:src_map_size - 1]
        rows.append(jnp.concatenate([jnp.zeros((1,), jnp.int32),
                                     perm.astype(jnp.int32)]))
    src_tgt_map = jnp.stack(rows)
    src_tgt_map = src_tgt_map.at[0, 3].set(-1).at[0, 5].set(0)
    src_tgt_map = src_tgt_map.at[1, 2].set(-1).at[1, 6].set(0)

    force_copy = False

    # run the Pallas kernels (both forward branches)
    loss_plain = copy_generator_loss(out_prob, copy_prob, align, target,
                                     src_tgt_map, 0.0,
                                     vocab_size=vocab_size, force_copy=force_copy)
    loss_ls = copy_generator_loss(out_prob, copy_prob, align, target,
                                  src_tgt_map, 0.1,
                                  vocab_size=vocab_size, force_copy=force_copy)
    jax.block_until_ready((loss_plain, loss_ls))

    # verify against numpy references mirroring the PyTorch code
    ref_p = _ref_no_ls(np.asarray(out_prob), np.asarray(copy_prob),
                       np.asarray(align), np.asarray(target),
                       vocab_size, force_copy, 0, 0, 1e-10)
    ref_l = _ref_ls(np.asarray(out_prob), np.asarray(copy_prob),
                    np.asarray(align), np.asarray(target),
                    np.asarray(src_tgt_map),
                    vocab_size, force_copy, 0, 0, 1e-10, 0.1)
    np.testing.assert_allclose(np.asarray(loss_plain), ref_p, rtol=2e-4, atol=2e-5)
    np.testing.assert_allclose(np.asarray(loss_ls), ref_l, rtol=2e-4, atol=2e-5)

    print("KERNEL_OK")
</pallas_src>

<mosaic_0001>
module attributes {stable_mosaic.version = 11 : i64} {
  func.func @_copy_loss_kernel(%arg0: i32, %arg1: i32, %arg2: memref<1x8x32xf32, #tpu.memory_space<vmem>>, %arg3: memref<1x8x8xf32, #tpu.memory_space<vmem>>, %arg4: memref<1x8x1xi32, #tpu.memory_space<vmem>>, %arg5: memref<1x8x1xi32, #tpu.memory_space<vmem>>, %arg6: memref<1x8x1xf32, #tpu.memory_space<vmem>>) attributes {dimension_semantics = [#tpu.dimension_semantics<parallel>, #tpu.dimension_semantics<parallel>], iteration_bounds = array<i64: 2, 1>, scalar_prefetch = 0 : i64, scratch_operands = 0 : i64, tpu.core_type = #tpu.core_type<tc>, window_params = [{transform_indices = @transform_0, window_bounds = array<i64: 1, 8, 32>}, {transform_indices = @transform_1, window_bounds = array<i64: 1, 8, 8>}, {transform_indices = @transform_2, window_bounds = array<i64: 1, 8, 1>}, {transform_indices = @transform_3, window_bounds = array<i64: 1, 8, 1>}, {transform_indices = @transform_4, window_bounds = array<i64: 1, 8, 1>}]} {
    %c0 = arith.constant 0 : index
    %c0_0 = arith.constant 0 : index
    %c0_1 = arith.constant 0 : index
    %0 = vector.load %arg2[%c0, %c0_0, %c0_1] : memref<1x8x32xf32, #tpu.memory_space<vmem>>, vector<1x8x32xf32>
    %1 = vector.shape_cast %0 : vector<1x8x32xf32> to vector<8x32xf32>
    %c0_2 = arith.constant 0 : index
    %c0_3 = arith.constant 0 : index
    %c0_4 = arith.constant 0 : index
    %2 = vector.load %arg3[%c0_2, %c0_3, %c0_4] : memref<1x8x8xf32, #tpu.memory_space<vmem>>, vector<1x8x8xf32>
    %3 = vector.shape_cast %2 : vector<1x8x8xf32> to vector<8x8xf32>
    %c0_5 = arith.constant 0 : index
    %c0_6 = arith.constant 0 : index
    %c0_7 = arith.constant 0 : index
    %4 = vector.load %arg4[%c0_5, %c0_6, %c0_7] : memref<1x8x1xi32, #tpu.memory_space<vmem>>, vector<1x8x1xi32>
    %5 = vector.shape_cast %4 : vector<1x8x1xi32> to vector<8x1xi32>
    %c0_8 = arith.constant 0 : index
    %c0_9 = arith.constant 0 : index
    %c0_10 = arith.constant 0 : index
    %6 = vector.load %arg5[%c0_8, %c0_9, %c0_10] : memref<1x8x1xi32, #tpu.memory_space<vmem>>, vector<1x8x1xi32>
    %7 = vector.shape_cast %6 : vector<1x8x1xi32> to vector<8x1xi32>
    %8 = tpu.iota {dimensions = array<i32: 1>} : vector<1x32xi32>
    %9 = tpu.iota {dimensions = array<i32: 1>} : vector<1x8xi32>
    %10 = vector.broadcast %8 : vector<1x32xi32> to vector<8x32xi32>
    %11 = vector.broadcast %5 : vector<8x1xi32> to vector<8x32xi32>
    %12 = arith.cmpi eq, %10, %11 : vector<8x32xi32>
    %cst = arith.constant 0.000000e+00 : f32
    %13 = vector.broadcast %cst : f32 to vector<8x32xf32>
    %14 = arith.select %12, %1, %13 : vector<8x32xi1>, vector<8x32xf32>
    %cst_11 = arith.constant dense<0.000000e+00> : vector<8xf32>
    %15 = vector.multi_reduction <add>, %14, %cst_11 [1] : vector<8x32xf32> to vector<8xf32>
    %16 = vector.shape_cast %15 : vector<8xf32> to vector<8x1xf32>
    %17 = vector.broadcast %9 : vector<1x8xi32> to vector<8x8xi32>
    %18 = vector.broadcast %7 : vector<8x1xi32> to vector<8x8xi32>
    %19 = arith.cmpi eq, %17, %18 : vector<8x8xi32>
    %cst_12 = arith.constant 0.000000e+00 : f32
    %20 = vector.broadcast %cst_12 : f32 to vector<8x8xf32>
    %21 = arith.select %19, %3, %20 : vector<8x8xi1>, vector<8x8xf32>
    %cst_13 = arith.constant dense<0.000000e+00> : vector<8xf32>
    %22 = vector.multi_reduction <add>, %21, %cst_13 [1] : vector<8x8xf32> to vector<8xf32>
    %23 = vector.shape_cast %22 : vector<8xf32> to vector<8x1xf32>
    %c0_i32 = arith.constant 0 : i32
    %24 = vector.broadcast %c0_i32 : i32 to vector<8x1xi32>
    %25 = arith.cmpi eq, %7, %24 : vector<8x1xi32>
    %cst_14 = arith.constant 0.000000e+00 : f32
    %26 = vector.broadcast %cst_14 : f32 to vector<8x1xf32>
    %27 = arith.select %25, %26, %23 : vector<8x1xi1>, vector<8x1xf32>
    %cst_15 = arith.constant 1.000000e-10 : f32
    %28 = vector.broadcast %cst_15 : f32 to vector<8x1xf32>
    %29 = arith.addf %27, %28 : vector<8x1xf32>
    %c0_i32_16 = arith.constant 0 : i32
    %30 = vector.broadcast %c0_i32_16 : i32 to vector<8x1xi32>
    %31 = arith.cmpi ne, %5, %30 : vector<8x1xi32>
    %32 = arith.ori %25, %31 : vector<8x1xi1>
    %33 = arith.addf %29, %16 : vector<8x1xf32>
    %34 = arith.select %32, %33, %29 : vector<8x1xi1>, vector<8x1xf32>
    %cst_17 = arith.constant 1.000000e-10 : f32
    %35 = vector.broadcast %cst_17 : f32 to vector<8x1xf32>
    %36 = arith.addf %34, %35 : vector<8x1xf32>
    %37 = math.log %36 : vector<8x1xf32>
    %cst_18 = arith.constant 0.000000e+00 : f32
    %38 = vector.broadcast %cst_18 : f32 to vector<8x1xf32>
    %39 = arith.subf %38, %37 : vector<8x1xf32>
    %40 = tpu.iota {dimensions = array<i32: 0>} : vector<8x1xi32>
    %c8_i32 = arith.constant 8 : i32
    %41 = arith.muli %arg1, %c8_i32 : i32
    %42 = vector.broadcast %41 : i32 to vector<8x1xi32>
    %43 = arith.addi %40, %42 : vector<8x1xi32>
    %c8_i32_19 = arith.constant 8 : i32
    %44 = vector.broadcast %c8_i32_19 : i32 to vector<8x1xi32>
    %45 = arith.cmpi slt, %43, %44 : vector<8x1xi32>
    %c0_i32_20 = arith.constant 0 : i32
    %46 = vector.broadcast %c0_i32_20 : i32 to vector<8x1xi32>
    %47 = arith.cmpi ne, %5, %46 : vector<8x1xi32>
    %48 = arith.andi %45, %47 : vector<8x1xi1>
    %cst_21 = arith.constant 0.000000e+00 : f32
    %49 = vector.broadcast %cst_21 : f32 to vector<8x1xf32>
    %50 = arith.select %48, %39, %49 : vector<8x1xi1>, vector<8x1xf32>
    %c0_22 = arith.constant 0 : index
    %c0_23 = arith.constant 0 : index
    %c0_24 = arith.constant 0 : index
    %51 = vector.load %arg6[%c0_22, %c0_23, %c0_24] : memref<1x8x1xf32, #tpu.memory_space<vmem>>, vector<1x8x1xf32>
    %52 = vector.shape_cast %51 : vector<1x8x1xf32> to vector<8x1xf32>
    %53 = vector.shape_cast %50 : vector<8x1xf32> to vector<1x8x1xf32>
    tpu.vector_store %arg6[%c0_22, %c0_23, %c0_24], %53 {strides = array<i32>} : memref<1x8x1xf32, #tpu.memory_space<vmem>>, vector<1x8x1xf32>,
    return
  }
  func.func @transform_0(%arg0: i32, %arg1: i32) -> (i32, i32, i32) {
    %c0_i32 = arith.constant 0 : i32
    %c0_i32_0 = arith.constant 0 : i32
    return %arg0, %arg1, %c0_i32 : i32, i32, i32
  }
  func.func @transform_1(%arg0: i32, %arg1: i32) -> (i32, i32, i32) {
    %c0_i32 = arith.constant 0 : i32
    %c0_i32_0 = arith.constant 0 : i32
    return %arg0, %arg1, %c0_i32 : i32, i32, i32
  }
  func.func @transform_2(%arg0: i32, %arg1: i32) -> (i32, i32, i32) {
    %c0_i32 = arith.constant 0 : i32
    %c0_i32_0 = arith.constant 0 : i32
    return %arg0, %arg1, %c0_i32 : i32, i32, i32
  }
  func.func @transform_3(%arg0: i32, %arg1: i32) -> (i32, i32, i32) {
    %c0_i32 = arith.constant 0 : i32
    %c0_i32_0 = arith.constant 0 : i32
    return %arg0, %arg1, %c0_i32 : i32, i32, i32
  }
  func.func @transform_4(%arg0: i32, %arg1: i32) -> (i32, i32, i32) {
    %c0_i32 = arith.constant 0 : i32
    %c0_i32_0 = arith.constant 0 : i32
    return %arg0, %arg1, %c0_i32 : i32, i32, i32
  }
}

</mosaic_0001>

<llo_original>
// kernel: tpu_custom_call.1
$region0: #{tpu_custom_call.1}
  #allocation0 [shape = 'u32[]', space=smem, size = 0x4, offset = 0x4, fixed_abs, tag = 'smem constant byte address 0x4 - core index']
  #allocation1 [shape = 'u32[72,128]{1,0:T(1,128)}', space=vmem, size = 0x9000, scoped, tag = 'internal scratch']
  %s0 = inlined_call_operand.vmem [shape: f32[2,8,32], index: 0, kind: input, shape index: {}]
  %s1 = inlined_call_operand.vmem [shape: f32[2,8,8], index: 1, kind: input, shape index: {}]
  %s2 = inlined_call_operand.vmem [shape: s32[2,8,1], index: 2, kind: input, shape index: {}]
  %s3 = inlined_call_operand.vmem [shape: s32[2,8,1], index: 3, kind: input, shape index: {}]
  %s4 = inlined_call_operand.vmem [shape: f32[2,8,1], index: 4, kind: output, shape index: {}]
  %s5 = sld [smem:[#allocation0]]
  $region49: #{tpu_custom_call.1} parent=0
    _
  %s7 = ssub.s32 1, %s5
  %s8 = scalar_select 0, %s7, %s5
  loop: start=0, step=1, limit=4
  $region2: #{tpu_custom_call.1} parent=0 // loop_pre_header
    _
  $region3: #{tpu_custom_call.1} parent=0 // loop_header
    %s10 = sphi 0, %s14
    %p11 = scmp.ge.s32.totalorder %s10, 4
    %s17 = sphi 0, %s29
    %s18 = sphi 0, %s25
    %s19 = sphi 0, %s17
    %s20 = sphi 0, %s18
    %s21 = sphi 0, %s19
    %s22 = sphi 0, %s20
    %s34 = sphi 0, %s36
    %s37 = sphi 0, %s34
    %s38 = sphi 0, %s37
    %s54 = sphi 0, %s38
    %s62 = sphi 0, %s64
    %s65 = sphi 0, %s62
    %s66 = sphi 0, %s65
    %s82 = sphi 0, %s66
    %s90 = sphi 0, %s92
    %s93 = sphi 0, %s90
    %s94 = sphi 0, %s93
    %s110 = sphi 0, %s94
    %s118 = sphi 0, %s120
    %s121 = sphi 0, %s118
    %s122 = sphi 0, %s121
    %s138 = sphi 0, %s122
    %s146 = sphi 0, %s148
    %s149 = sphi 0, %s146
    %s150 = sphi 0, %s149
    %s166 = sphi 0, %s150
  $region4: #{tpu_custom_call.1} parent=0 // loop_header_branch
    %13 = sbr.rel (%p11) target = $region8
  $region5: #{tpu_custom_call.1} parent=0 // loop_body
    %s15 = ssub.s32 %s10, 1
    %s16 = ssub.s32 %s10, 2
    %s23 = sadd.s32 1, %s18
    %p24 = scmp.ge.s32.totalorder %s23, 1
    %s25 = scalar_select %p24, 0, %s23
    %s26 = sadd.s32 1, %s17
    %s27 = scalar_select %p24, %s26, %s17
    %p28 = scmp.ge.s32.totalorder %s27, 2
    %s29 = scalar_select %p28, 0, %s27
    %s30 = ssub.s32 %s17, %s29
    %s31 = ssub.s32 %s18, %s25
    %s32 = sor.u32 %s30, %s31
    %p33 = scmp.eq.s32.totalorder %s32, 0
    %s35 = sadd.s32 %s34, 1
    %s36 = scalar_select %p33, %s34, %s35
    %p39 = pneg %p33
    %p40 = scmp.eq.s32.totalorder %s10, 1
    %p41 = por %p39, %p40
    %p42 = scmp.ne.s32.totalorder %s34, %s37
    %p43 = scmp.eq.s32.totalorder %s10, 0
    %p44 = por %p42, %p43
    %p45 = scmp.ne.s32.totalorder %s34, %s37
    %p46 = scmp.eq.s32.totalorder %s15, 1
    %p47 = por %p45, %p46
    %p48 = scmp.ne.s32.totalorder %s37, %s38
    %p49 = scmp.eq.s32.totalorder %s15, 0
    %p50 = por %p48, %p49
    %p51 = scmp.ne.s32.totalorder %s37, %s38
    %p52 = scmp.eq.s32.totalorder %s16, 1
    %p53 = por %p51, %p52
    %p55 = scmp.ne.s32.totalorder %s38, %s54
    %p56 = scmp.eq.s32.totalorder %s16, 0
    %p57 = por %p55, %p56
    %s58 = ssub.s32 %s17, %s29
    %s59 = ssub.s32 %s18, %s25
    %s60 = sor.u32 %s58, %s59
    %p61 = scmp.eq.s32.totalorder %s60, 0
    %s63 = sadd.s32 %s62, 1
    %s64 = scalar_select %p61, %s62, %s63
    %p67 = pneg %p61
    %p68 = scmp.eq.s32.totalorder %s10, 1
    %p69 = por %p67, %p68
    %p70 = scmp.ne.s32.totalorder %s62, %s65
    %p71 = scmp.eq.s32.totalorder %s10, 0
    %p72 = por %p70, %p71
    %p73 = scmp.ne.s32.totalorder %s62, %s65
    %p74 = scmp.eq.s32.totalorder %s15, 1
    %p75 = por %p73, %p74
    %p76 = scmp.ne.s32.totalorder %s65, %s66
    %p77 = scmp.eq.s32.totalorder %s15, 0
    %p78 = por %p76, %p77
    %p79 = scmp.ne.s32.totalorder %s65, %s66
    %p80 = scmp.eq.s32.totalorder %s16, 1
    %p81 = por %p79, %p80
    %p83 = scmp.ne.s32.totalorder %s66, %s82
    %p84 = scmp.eq.s32.totalorder %s16, 0
    %p85 = por %p83, %p84
    %s86 = ssub.s32 %s17, %s29
    %s87 = ssub.s32 %s18, %s25
    %s88 = sor.u32 %s86, %s87
    %p89 = scmp.eq.s32.totalorder %s88, 0
    %s91 = sadd.s32 %s90, 1
    %s92 = scalar_select %p89, %s90, %s91
    %p95 = pneg %p89
    %p96 = scmp.eq.s32.totalorder %s10, 1
    %p97 = por %p95, %p96
    %p98 = scmp.ne.s32.totalorder %s90, %s93
    %p99 = scmp.eq.s32.totalorder %s10, 0
    %p100 = por %p98, %p99
    %p101 = scmp.ne.s32.totalorder %s90, %s93
    %p102 = scmp.eq.s32.totalorder %s15, 1
    %p103 = por %p101, %p102
    %p104 = scmp.ne.s32.totalorder %s93, %s94
    %p105 = scmp.eq.s32.totalorder %s15, 0
    %p106 = por %p104, %p105
    %p107 = scmp.ne.s32.totalorder %s93, %s94
    %p108 = scmp.eq.s32.totalorder %s16, 1
    %p109 = por %p107, %p108
    %p111 = scmp.ne.s32.totalorder %s94, %s110
    %p112 = scmp.eq.s32.totalorder %s16, 0
    %p113 = por %p111, %p112
    %s114 = ssub.s32 %s17, %s29
    %s115 = ssub.s32 %s18, %s25
    %s116 = sor.u32 %s114, %s115
    %p117 = scmp.eq.s32.totalorder %s116, 0
    %s119 = sadd.s32 %s118, 1
    %s120 = scalar_select %p117, %s118, %s119
    %p123 = pneg %p117
    %p124 = scmp.eq.s32.totalorder %s10, 1
    %p125 = por %p123, %p124
    %p126 = scmp.ne.s32.totalorder %s118, %s121
    %p127 = scmp.eq.s32.totalorder %s10, 0
    %p128 = por %p126, %p127
    %p129 = scmp.ne.s32.totalorder %s118, %s121
    %p130 = scmp.eq.s32.totalorder %s15, 1
    %p131 = por %p129, %p130
    %p132 = scmp.ne.s32.totalorder %s121, %s122
    %p133 = scmp.eq.s32.totalorder %s15, 0
    %p134 = por %p132, %p133
    %p135 = scmp.ne.s32.totalorder %s121, %s122
    %p136 = scmp.eq.s32.totalorder %s16, 1
    %p137 = por %p135, %p136
    %p139 = scmp.ne.s32.totalorder %s122, %s138
    %p140 = scmp.eq.s32.totalorder %s16, 0
    %p141 = por %p139, %p140
    %s142 = ssub.s32 %s17, %s29
    %s143 = ssub.s32 %s18, %s25
    %s144 = sor.u32 %s142, %s143
    %p145 = scmp.eq.s32.totalorder %s144, 0
    %s147 = sadd.s32 %s146, 1
    %s148 = scalar_select %p145, %s146, %s147
    %p151 = pneg %p145
    %p152 = scmp.eq.s32.totalorder %s10, 1
    %p153 = por %p151, %p152
    %p154 = scmp.ne.s32.totalorder %s146, %s149
    %p155 = scmp.eq.s32.totalorder %s10, 0
    %p156 = por %p154, %p155
    %p157 = scmp.ne.s32.totalorder %s146, %s149
    %p158 = scmp.eq.s32.totalorder %s15, 1
    %p159 = por %p157, %p158
    %p160 = scmp.ne.s32.totalorder %s149, %s150
    %p161 = scmp.eq.s32.totalorder %s15, 0
    %p162 = por %p160, %p161
    %p163 = scmp.ne.s32.totalorder %s149, %s150
    %p164 = scmp.eq.s32.totalorder %s16, 1
    %p165 = por %p163, %p164
    %p167 = scmp.ne.s32.totalorder %s150, %s166
    %p168 = scmp.eq.s32.totalorder %s16, 0
    %p169 = por %p167, %p168
    %p170 = scmp.le.s32.totalorder 1, %s10
    %p171 = scmp.lt.s32.totalorder %s10, 3
    %p172 = pnand %p170, %p171
    %p173 = pneg %p172
    // Predicated region
    $region9: #{tpu_custom_call.1} parent=5 // pred_check
      _
    $region10: #{tpu_custom_call.1} parent=5 // pred_check_branch
      %175 = sbr.rel (%p172) target = $region12
    $region11: #{tpu_custom_call.1} parent=5 // pred_region
      %s176 = ssub.s32 %s10, 1
    $region12: #{tpu_custom_call.1} parent=5 // pred_fallthru
      _
    %p177 = scmp.lt.s32.totalorder %s10, 2
    // Predicated region
    $region13: #{tpu_custom_call.1} parent=5 // pred_check
      %p178 = pneg %p177
    $region14: #{tpu_custom_call.1} parent=5 // pred_check_branch
      %180 = sbr.rel (%p178) target = $region16
    $region15: #{tpu_custom_call.1} parent=5 // pred_region
      // Predicated region
      $region17: #{tpu_custom_call.1} parent=15 // pred_check
        %p181 = pneg %p44
      $region18: #{tpu_custom_call.1} parent=15 // pred_check_branch
        %183 = sbr.rel (%p181) target = $region20
      $region19: #{tpu_custom_call.1} parent=15 // pred_region
        %p184 = scmp.lt.s32.totalorder %s17, 1
        %s185 = scalar_select %p184, %s17, 1
        %p186 = scmp.lt.s32.totalorder %s18, 0
        %s187 = scalar_select %p186, %s18, 0
        %s188 = sadd.s32 %s187, %s185
        %s189 = smul.addr %s188, 8
        %s190 = scalar_lea.vmem %s0, %s189
      $region20: #{tpu_custom_call.1} parent=15 // pred_fallthru
        _
      // Predicated region
      $region21: #{tpu_custom_call.1} parent=15 // pred_check
        %p191 = pneg %p72
      $region22: #{tpu_custom_call.1} parent=15 // pred_check_branch
        %193 = sbr.rel (%p191) target = $region24
      $region23: #{tpu_custom_call.1} parent=15 // pred_region
        %p194 = scmp.lt.s32.totalorder %s17, 1
        %s195 = scalar_select %p194, %s17, 1
        %p196 = scmp.lt.s32.totalorder %s18, 0
        %s197 = scalar_select %p196, %s18, 0
        %s198 = sadd.s32 %s197, %s195
        %s199 = smul.addr %s198, 8
        %s200 = scalar_lea.vmem %s1, %s199
      $region24: #{tpu_custom_call.1} parent=15 // pred_fallthru
        _
      // Predicated region
      $region25: #{tpu_custom_call.1} parent=15 // pred_check
        %p201 = pneg %p100
      $region26: #{tpu_custom_call.1} parent=15 // pred_check_branch
        %203 = sbr.rel (%p201) target = $region28
      $region27: #{tpu_custom_call.1} parent=15 // pred_region
        %p204 = scmp.lt.s32.totalorder %s17, 1
        %s205 = scalar_select %p204, %s17, 1
        %p206 = scmp.lt.s32.totalorder %s18, 0
        %s207 = scalar_select %p206, %s18, 0
        %s208 = sadd.s32 %s207, %s205
        %s209 = smul.addr %s208, 8
        %s210 = scalar_lea.vmem %s2, %s209
      $region28: #{tpu_custom_call.1} parent=15 // pred_fallthru
        _
      // Predicated region
      $region29: #{tpu_custom_call.1} parent=15 // pred_check
        %p211 = pneg %p128
      $region30: #{tpu_custom_call.1} parent=15 // pred_check_branch
        %213 = sbr.rel (%p211) target = $region32
      $region31: #{tpu_custom_call.1} parent=15 // pred_region
        %p214 = scmp.lt.s32.totalorder %s17, 1
        %s215 = scalar_select %p214, %s17, 1
        %p216 = scmp.lt.s32.totalorder %s18, 0
        %s217 = scalar_select %p216, %s18, 0
        %s218 = sadd.s32 %s217, %s215
        %s219 = smul.addr %s218, 8
        %s220 = scalar_lea.vmem %s3, %s219
      $region32: #{tpu_custom_call.1} parent=15 // pred_fallthru
        _
    $region16: #{tpu_custom_call.1} parent=5 // pred_fallthru
      _
    %p221 = scmp.le.s32.totalorder 1, %s10
    %p222 = scmp.lt.s32.totalorder %s10, 3
    %p223 = pnand %p221, %p222
    %p224 = pneg %p223
    // Predicated region
    $region33: #{tpu_custom_call.1} parent=5 // pred_check
      _
    $region34: #{tpu_custom_call.1} parent=5 // pred_check_branch
      %226 = sbr.rel (%p223) target = $region36
    $region35: #{tpu_custom_call.1} parent=5 // pred_region
      %s227 = ssub.s32 %s10, 1
      %p228 = scmp.lt.s32.totalorder %s19, 1
      %s229 = scalar_select %p228, %s19, 1
      %p230 = scmp.lt.s32.totalorder %s20, 0
      %s231 = scalar_select %p230, %s20, 0
      %s232 = sadd.s32 %s231, %s229
      %s233 = smul.addr %s232, 8
      %s234 = scalar_lea.vmem %s0, %s233
      %p235 = pneg %p50
      %p236 = pneg %p47
      %p237 = scmp.lt.s32.totalorder %s19, 1
      %s238 = scalar_select %p237, %s19, 1
      %p239 = scmp.lt.s32.totalorder %s20, 0
      %s240 = scalar_select %p239, %s20, 0
      %s241 = sadd.s32 %s240, %s238
      %s242 = smul.addr %s241, 8
      %s243 = scalar_lea.vmem %s1, %s242
      %p244 = pneg %p78
      %p245 = pneg %p75
      %p246 = scmp.lt.s32.totalorder %s19, 1
      %s247 = scalar_select %p246, %s19, 1
      %p248 = scmp.lt.s32.totalorder %s20, 0
      %s249 = scalar_select %p248, %s20, 0
      %s250 = sadd.s32 %s249, %s247
      %s251 = smul.addr %s250, 8
      %s252 = scalar_lea.vmem %s2, %s251
      %p253 = pneg %p106
      %p254 = pneg %p103
      %p255 = scmp.lt.s32.totalorder %s19, 1
      %s256 = scalar_select %p255, %s19, 1
      %p257 = scmp.lt.s32.totalorder %s20, 0
      %s258 = scalar_select %p257, %s20, 0
      %s259 = sadd.s32 %s258, %s256
      %s260 = smul.addr %s259, 8
      %s261 = scalar_lea.vmem %s3, %s260
      %p262 = pneg %p134
      %p263 = pneg %p131
      %p264 = pneg %p162
      %p265 = pneg %p159
      %p266 = scmp.lt.s32.totalorder %s19, 1
      %s267 = scalar_select %p266, %s19, 1
      %p268 = scmp.lt.s32.totalorder %s20, 0
      %s269 = scalar_select %p268, %s20, 0
      %s270 = sadd.s32 %s269, %s267
      %s271 = smul.addr %s270, 8
      %s272 = scalar_lea.vmem %s4, %s271
      %p273 = scmp.lt.s32.totalorder %s19, 1
      %s274 = scalar_select %p273, %s19, 1
      %p275 = scmp.lt.s32.totalorder %s20, 0
      %s276 = scalar_select %p275, %s20, 0
      %s277 = sadd.s32 %s276, %s274
      %s278 = smul.addr %s277, 8
      %s279 = scalar_lea.vmem %s0, %s278
      %p280 = scmp.lt.s32.totalorder %s19, 1
      %s281 = scalar_select %p280, %s19, 1
      %p282 = scmp.lt.s32.totalorder %s20, 0
      %s283 = scalar_select %p282, %s20, 0
      %s284 = sadd.s32 %s283, %s281
      %s285 = smul.addr %s284, 8
      %s286 = scalar_lea.vmem %s1, %s285
      %p287 = scmp.lt.s32.totalorder %s19, 1
      %s288 = scalar_select %p287, %s19, 1
      %p289 = scmp.lt.s32.totalorder %s20, 0
      %s290 = scalar_select %p289, %s20, 0
      %s291 = sadd.s32 %s290, %s288
      %s292 = smul.addr %s291, 8
      %s293 = scalar_lea.vmem %s2, %s292
      %p294 = scmp.lt.s32.totalorder %s19, 1
      %s295 = scalar_select %p294, %s19, 1
      %p296 = scmp.lt.s32.totalorder %s20, 0
      %s297 = scalar_select %p296, %s20, 0
      %s298 = sadd.s32 %s297, %s295
      %s299 = smul.addr %s298, 8
      %s300 = scalar_lea.vmem %s3, %s299
      %p301 = scmp.lt.s32.totalorder %s19, 1
      %s302 = scalar_select %p301, %s19, 1
      %p303 = scmp.lt.s32.totalorder %s20, 0
      %s304 = scalar_select %p303, %s20, 0
      %s305 = sadd.s32 %s304, %s302
      %s306 = smul.addr %s305, 8
      %s307 = scalar_lea.vmem %s4, %s306
      %v308 = vld [vmem:[%s279] sm:$0xff]
      %v309 = vld [vmem:[%s286] sm:$0xff]
      %v310 = vld [vmem:[%s293] sm:$0xff]
      %v311 = vld [vmem:[%s300] sm:$0xff]
      %v312 = vlaneseq
      %v313 = vand.u32 %v312, 127
      %314 = vset.pattern.permute.xlu0 0
      %315 = vperm.xlu0 %314, %v310
      %v316 = vpop.permute.xlu0 %315
      %vm317 = vcmp.eq.s32.totalorder %v313, %v316
      %v318 = vsel %vm317, %v308, 0.0
      %vm319 = vcmask 261120
      %v320 = vsel %vm319, %v318, 0.0
      %321 = vadd.xlane.f32.xlu0 %v320
      %v322 = vpop.xlane.xlu0 %321
      %323 = vset.pattern.permute.xlu0 0
      %324 = vperm.xlu0 %323, %v311
      %v325 = vpop.permute.xlu0 %324
      %vm326 = vcmp.eq.s32.totalorder %v313, %v325
      %v327 = vsel %vm326, %v309, 0.0
      %vm328 = vcmask 64512
      %v329 = vsel %vm328, %v327, 0.0
      %330 = vadd.xlane.f32.xlu0 %v329
      %v331 = vpop.xlane.xlu0 %330
      %vm332 = vcmp.eq.s32.totalorder %v311, 0
      %v333 = vsel %vm332, 0.0, %v331
      %v334 = vadd.f32 %v333, 1e-10
      %vm335 = vcmp.ne.s32.totalorder %v310, 0
      %vm336 = vmor %vm332, %vm335
      %v337 = vadd.f32 %v334, %v322
      %v338 = vsel %vm336, %v337, %v334
      %v339 = vadd.f32 %v338, 1e-10
      %v340 = vlog2.pop %v339
      %v341 = vmul.f32 %v340, 0.6931472
      %v342 = vsub.f32 0.0, %v341
      %v343 = vlaneseq
      %v344 = vshrl.u32 %v343, 7
      %s345 = smul.u32 %s20, 8
      %v346 = vstv %s345
      %v347 = vadd.s32 %v344, %v346
      %vm348 = vcmp.lt.s32.totalorder %v347, 8
      %vm349 = vmand %vm348, %vm335
      %v350 = vsel %vm349, %v342, 0.0
      %vm351 = vcmask 7168
      %352 = vst.msk [vmem:[%s307] sm:$0xff] %vm351, %v350
      %p353 = scmp.lt.s32.totalorder %s19, 1
      %s354 = scalar_select %p353, %s19, 1
      %p355 = scmp.lt.s32.totalorder %s20, 0
      %s356 = scalar_select %p355, %s20, 0
      %s357 = sadd.s32 %s356, %s354
      %s358 = smul.addr %s357, 8
      %s359 = scalar_lea.vmem %s4, %s358
      // Predicated region
      $region37: #{tpu_custom_call.1} parent=35 // pred_check
        %p360 = pneg %p159
      $region38: #{tpu_custom_call.1} parent=35 // pred_check_branch
        %362 = sbr.rel (%p360) target = $region40
      $region39: #{tpu_custom_call.1} parent=35 // pred_region
        _
      $region40: #{tpu_custom_call.1} parent=35 // pred_fallthru
        _
    $region36: #{tpu_custom_call.1} parent=5 // pred_fallthru
      _
    %p363 = scmp.le.s32.totalorder 2, %s10
    // Predicated region
    $region41: #{tpu_custom_call.1} parent=5 // pred_check
      %p364 = pneg %p363
    $region42: #{tpu_custom_call.1} parent=5 // pred_check_branch
      %366 = sbr.rel (%p364) target = $region44
    $region43: #{tpu_custom_call.1} parent=5 // pred_region
      %s367 = ssub.s32 %s10, 2
      // Predicated region
      $region45: #{tpu_custom_call.1} parent=43 // pred_check
        %p368 = pneg %p165
      $region46: #{tpu_custom_call.1} parent=43 // pred_check_branch
        %370 = sbr.rel (%p368) target = $region48
      $region47: #{tpu_custom_call.1} parent=43 // pred_region
        %p371 = scmp.lt.s32.totalorder %s21, 1
        %s372 = scalar_select %p371, %s21, 1
        %p373 = scmp.lt.s32.totalorder %s22, 0
        %s374 = scalar_select %p373, %s22, 0
        %s375 = sadd.s32 %s374, %s372
        %s376 = smul.addr %s375, 8
        %s377 = scalar_lea.vmem %s4, %s376
      $region48: #{tpu_custom_call.1} parent=43 // pred_fallthru
        _
    $region44: #{tpu_custom_call.1} parent=5 // pred_fallthru
      _
  $region6: #{tpu_custom_call.1} parent=0 // loop_footer
    %s14 = sadd.s32 1, %s10
  $region7: #{tpu_custom_call.1} parent=0 // loop_footer_branch
    %9 = sbr.rel target = $region3
  $region8: #{tpu_custom_call.1} parent=0 // loop_exit
    _

</llo_original>
